<compile_context>
chip_gen: v7x
topology: tpu7x:2x2x1
jax: 0.10.0
libtpu: 0.0.40
codegen_flags: <defaults>
</compile_context>

<pallas_src>
import functools

import jax
import jax.numpy as jnp
from jax.experimental import pallas as pl
from jax.experimental.pallas import tpu as pltpu

EPS = 1e-5

TILE_BYTES_CAP = 4 << 20           # per-tile input bytes for the streaming path
STREAM_VMEM_LIMIT = 32 << 20       # scoped VMEM for streaming passes (fits v7x 64 MiB)
RESIDENT_MAX_F32_BYTES = 6 << 20   # f32-equivalent array-size gate for residency
RESIDENT_VMEM_LIMIT = 48 << 20     # scoped VMEM for the resident path


# --------------------------- resident single-read path ---------------------------

def _bn_resident_kernel(x_hbm, gamma_ref, beta_ref, o_hbm, xbuf, sem, *,
                        eps, inv_count):
    """Whole array resident in VMEM: stats + normalize + ReLU, one HBM read."""
    cp_in = pltpu.make_async_copy(x_hbm, xbuf, sem)
    cp_in.start()
    cp_in.wait()

    x = xbuf[...].astype(jnp.float32)                            # (N, C, HW)
    mean = jnp.sum(jnp.sum(x, axis=2, keepdims=True), axis=0,
                   keepdims=True) * inv_count                    # (1, C, 1)
    xc = x - mean
    var = jnp.sum(jnp.sum(xc * xc, axis=2, keepdims=True), axis=0,
                  keepdims=True) * inv_count                     # centered (stable)
    g = gamma_ref[...][None]                                     # (1, C, 1)
    b = beta_ref[...][None]                                      # (1, C, 1)
    scale = g * jax.lax.rsqrt(var + eps)
    y = jnp.maximum(xc * scale + b, 0.0)
    xbuf[...] = y.astype(xbuf.dtype)

    cp_out = pltpu.make_async_copy(xbuf, o_hbm, sem)
    cp_out.start()
    cp_out.wait()


# --------------------------- streaming two-pass path -----------------------------

def _bn_partial_kernel(x_ref, part_ref, *, hw, tile_hw):
    """Per-(n, tile) partial (sum, sumsq) into a (1, 1, C, 2) output block."""
    x = x_ref[0].astype(jnp.float32)                             # (C, TH)
    if hw % tile_hw:                                             # trace-time: ragged last tile
        lane = jax.lax.broadcasted_iota(jnp.int32, x.shape, 1)
        x = jnp.where(pl.program_id(1) * tile_hw + lane < hw, x, 0.0)
    # Per-tile cross-lane reductions run on the XLU, which has slack in this
    # HBM-bound kernel; total grid-output bytes are negligible.
    part_ref[0, 0, :, 0:1] = jnp.sum(x, axis=-1, keepdims=True)
    part_ref[0, 0, :, 1:2] = jnp.sum(x * x, axis=-1, keepdims=True)


def _bn_apply_kernel(x_ref, ss_ref, o_ref):
    """y = max(x * scale + shift, 0) for one (1, C, TH) tile."""
    x = x_ref[0].astype(jnp.float32)                             # (C, TH)
    scale = ss_ref[:, 0:1]                                       # (C, 1)
    shift = ss_ref[:, 1:2]                                       # (C, 1)
    o_ref[0] = jnp.maximum(x * scale + shift, 0.0).astype(o_ref.dtype)


def _pick_tile_hw(hw, c, itemsize, max_bytes):
    """Lane-aligned tile width along H*W whose (C, tile) slab fits max_bytes."""
    bytes_per_lane = max(1, c * itemsize)
    cap = max(128, (max_bytes // bytes_per_lane) // 128 * 128)
    if hw <= cap:
        return hw        # single tile per row (block dim == array dim is allowed)
    return cap           # multiple of 128; ragged last tile is masked / OOB-dropped


def norm_relu(x_nchw, gamma, beta, eps=EPS, *, force_two_pass=False,
              tile_bytes_cap=TILE_BYTES_CAP):
    """BatchNorm2d (training-mode batch stats, affine) + ReLU on NCHW input."""
    N, C, H, W = x_nchw.shape
    HW = H * W
    x3 = x_nchw.reshape(N, C, HW)                   # lane-dense view, no transpose
    g = gamma.reshape(C, 1).astype(jnp.float32)
    b = beta.reshape(C, 1).astype(jnp.float32)
    inv_count = 1.0 / float(N * HW)

    # ---- Path 1: VMEM-resident single-HBM-read variant (small activations). ----
    if (not force_two_pass) and N * C * HW * 4 <= RESIDENT_MAX_F32_BYTES:
        out3 = pl.pallas_call(
            functools.partial(_bn_resident_kernel, eps=eps, inv_count=inv_count),
            out_shape=jax.ShapeDtypeStruct((N, C, HW), x_nchw.dtype),
            in_specs=[
                pl.BlockSpec(memory_space=pl.ANY),                   # x stays in HBM
                pl.BlockSpec(memory_space=pltpu.MemorySpace.VMEM),   # gamma
                pl.BlockSpec(memory_space=pltpu.MemorySpace.VMEM),   # beta
            ],
            out_specs=pl.BlockSpec(memory_space=pl.ANY),             # written via DMA
            scratch_shapes=[
                pltpu.VMEM((N, C, HW), x_nchw.dtype),
                pltpu.SemaphoreType.DMA(()),
            ],
            compiler_params=pltpu.CompilerParams(
                vmem_limit_bytes=RESIDENT_VMEM_LIMIT),
        )(x3, g, b)
        return out3.reshape(N, C, H, W)

    # ---- Path 2: streaming two-pass variant. -----------------------------------
    itemsize = jnp.dtype(x_nchw.dtype).itemsize     # dtype-aware tile sizing
    tile_hw = _pick_tile_hw(HW, C, itemsize, tile_bytes_cap)
    n_tiles = -(-HW // tile_hw)

    # Pass 1: per-(n, tile) partial sums; fully parallel grid (megacore-friendly).
    partials = pl.pallas_call(
        functools.partial(_bn_partial_kernel, hw=HW, tile_hw=tile_hw),
        out_shape=jax.ShapeDtypeStruct((N, n_tiles, C, 2), jnp.float32),
        grid=(N, n_tiles),
        in_specs=[pl.BlockSpec((1, C, tile_hw), lambda n, t: (n, 0, t))],
        out_specs=pl.BlockSpec((1, 1, C, 2), lambda n, t: (n, t, 0, 0)),
        compiler_params=pltpu.CompilerParams(
            dimension_semantics=("parallel", "parallel"),
            vmem_limit_bytes=STREAM_VMEM_LIMIT),
    )(x3)

    # Tiny finalize in plain XLA: batch mean/var -> per-channel (scale, shift).
    total = jnp.sum(partials, axis=(0, 1))                       # (C, 2)
    mean = total[:, 0:1] * inv_count
    var = jnp.maximum(total[:, 1:2] * inv_count - mean * mean, 0.0)
    scale = g * jax.lax.rsqrt(var + eps)
    shift = b - mean * scale
    ss = jnp.concatenate([scale, shift], axis=1)                 # (C, 2)

    # Pass 2: y = max(x * scale + shift, 0), fully parallel tiles.
    out3 = pl.pallas_call(
        _bn_apply_kernel,
        out_shape=jax.ShapeDtypeStruct((N, C, HW), x_nchw.dtype),
        grid=(N, n_tiles),
        in_specs=[
            pl.BlockSpec((1, C, tile_hw), lambda n, t: (n, 0, t)),
            pl.BlockSpec((C, 2), lambda n, t: (0, 0)),
        ],
        out_specs=pl.BlockSpec((1, C, tile_hw), lambda n, t: (n, 0, t)),
        compiler_params=pltpu.CompilerParams(
            dimension_semantics=("parallel", "parallel"),
            vmem_limit_bytes=STREAM_VMEM_LIMIT),
    )(x3, ss)
    return out3.reshape(N, C, H, W)


def norm_relu_reference(x_nchw, gamma, beta, eps=EPS):
    """Pure-JAX reference (PyTorch training-mode BatchNorm2d + ReLU)."""
    mean = jnp.mean(x_nchw, axis=(0, 2, 3), keepdims=True)
    var = jnp.mean(jnp.square(x_nchw - mean), axis=(0, 2, 3), keepdims=True)
    y = (x_nchw - mean) * jax.lax.rsqrt(var + eps)
    y = y * gamma.reshape(1, -1, 1, 1) + beta.reshape(1, -1, 1, 1)
    return jnp.maximum(y, 0.0)


if __name__ == "__main__":
    key = jax.random.PRNGKey(0)
    k0, k1 = jax.random.split(key)

    N, C, H, W = 2, 4, 16, 16
    # Non-zero-mean data to exercise the variance numerics.
    x = jax.random.normal(k0, (N, C, H, W), dtype=jnp.float32) * 0.5 + 1.5
    gamma = jnp.linspace(0.5, 1.5, C, dtype=jnp.float32)
    beta = jnp.linspace(-0.2, 0.3, C, dtype=jnp.float32)
    ref = norm_relu_reference(x, gamma, beta)

    # 1) VMEM-resident single-HBM-read path (default for small arrays).
    out_res = jax.block_until_ready(norm_relu(x, gamma, beta))
    assert out_res.shape == (N, C, H, W)
    err = float(jnp.max(jnp.abs(out_res - ref)))
    assert jnp.allclose(out_res, ref, atol=1e-4, rtol=1e-4), err

    # 2) Streaming two-pass path, forced with tiny tiles (multi-tile grid).
    out_str = jax.block_until_ready(
        norm_relu(x, gamma, beta, force_two_pass=True, tile_bytes_cap=2048))
    err = float(jnp.max(jnp.abs(out_str - ref)))
    assert jnp.allclose(out_str, ref, atol=1e-4, rtol=1e-4), err

    # 3) Streaming path on a ragged spatial size (masked last tile).
    xr = jax.random.normal(k1, (2, 4, 15, 15), dtype=jnp.float32) * 0.3 + 0.7
    ref_r = norm_relu_reference(xr, gamma, beta)
    out_r = jax.block_until_ready(
        norm_relu(xr, gamma, beta, force_two_pass=True, tile_bytes_cap=2048))
    err = float(jnp.max(jnp.abs(out_r - ref_r)))
    assert jnp.allclose(out_r, ref_r, atol=1e-4, rtol=1e-4), err

    print("KERNEL_OK")
</pallas_src>

<mosaic_0001>
module attributes {stable_mosaic.version = 11 : i64} {
  func.func @_bn_resident_kernel(%arg0: memref<2x4x256xf32, #tpu.memory_space<any>>, %arg1: memref<4x1xf32, #tpu.memory_space<vmem>>, %arg2: memref<4x1xf32, #tpu.memory_space<vmem>>, %arg3: memref<2x4x256xf32, #tpu.memory_space<any>>, %arg4: memref<2x4x256xf32, #tpu.memory_space<vmem>>, %arg5: memref<!tpu.dma_semaphore, #tpu.memory_space<semaphore_mem>>) attributes {dimension_semantics = [], scalar_prefetch = 0 : i64, scratch_operands = 2 : i64, tpu.core_type = #tpu.core_type<tc>} {
    tpu.enqueue_dma source(%arg0 : memref<2x4x256xf32, #tpu.memory_space<any>>) target(%arg4 : memref<2x4x256xf32, #tpu.memory_space<vmem>>) target_semaphore(%arg5 : memref<!tpu.dma_semaphore, #tpu.memory_space<semaphore_mem>>)
    tpu.wait_dma2 semaphore(%arg5 : memref<!tpu.dma_semaphore, #tpu.memory_space<semaphore_mem>>) src(%arg0 : memref<2x4x256xf32, #tpu.memory_space<any>>) dst(%arg4 : memref<2x4x256xf32, #tpu.memory_space<vmem>>)
    %c0 = arith.constant 0 : index
    %c0_0 = arith.constant 0 : index
    %c0_1 = arith.constant 0 : index
    %0 = vector.load %arg4[%c0, %c0_0, %c0_1] : memref<2x4x256xf32, #tpu.memory_space<vmem>>, vector<2x4x256xf32>
    %cst = arith.constant dense<0.000000e+00> : vector<2x4xf32>
    %1 = vector.multi_reduction <add>, %0, %cst [2] : vector<2x4x256xf32> to vector<2x4xf32>
    %2 = vector.shape_cast %1 : vector<2x4xf32> to vector<2x4x1xf32>
    %cst_2 = arith.constant dense<0.000000e+00> : vector<4x1xf32>
    %3 = vector.multi_reduction <add>, %2, %cst_2 [0] : vector<2x4x1xf32> to vector<4x1xf32>
    %4 = vector.shape_cast %3 : vector<4x1xf32> to vector<1x4x1xf32>
    %cst_3 = arith.constant 0.001953125 : f32
    %5 = vector.broadcast %cst_3 : f32 to vector<1x4x1xf32>
    %6 = arith.mulf %4, %5 : vector<1x4x1xf32>
    %7 = vector.broadcast %6 : vector<1x4x1xf32> to vector<2x4x256xf32>
    %8 = arith.subf %0, %7 : vector<2x4x256xf32>
    %9 = arith.mulf %8, %8 : vector<2x4x256xf32>
    %cst_4 = arith.constant dense<0.000000e+00> : vector<2x4xf32>
    %10 = vector.multi_reduction <add>, %9, %cst_4 [2] : vector<2x4x256xf32> to vector<2x4xf32>
    %11 = vector.shape_cast %10 : vector<2x4xf32> to vector<2x4x1xf32>
    %cst_5 = arith.constant dense<0.000000e+00> : vector<4x1xf32>
    %12 = vector.multi_reduction <add>, %11, %cst_5 [0] : vector<2x4x1xf32> to vector<4x1xf32>
    %13 = vector.shape_cast %12 : vector<4x1xf32> to vector<1x4x1xf32>
    %cst_6 = arith.constant 0.001953125 : f32
    %14 = vector.broadcast %cst_6 : f32 to vector<1x4x1xf32>
    %15 = arith.mulf %13, %14 : vector<1x4x1xf32>
    %c0_7 = arith.constant 0 : index
    %c0_8 = arith.constant 0 : index
    %16 = vector.load %arg1[%c0_7, %c0_8] : memref<4x1xf32, #tpu.memory_space<vmem>>, vector<4x1xf32>
    %17 = vector.shape_cast %16 : vector<4x1xf32> to vector<1x4x1xf32>
    %c0_9 = arith.constant 0 : index
    %c0_10 = arith.constant 0 : index
    %18 = vector.load %arg2[%c0_9, %c0_10] : memref<4x1xf32, #tpu.memory_space<vmem>>, vector<4x1xf32>
    %19 = vector.shape_cast %18 : vector<4x1xf32> to vector<1x4x1xf32>
    %cst_11 = arith.constant 9.99999974E-6 : f32
    %20 = vector.broadcast %cst_11 : f32 to vector<1x4x1xf32>
    %21 = arith.addf %15, %20 : vector<1x4x1xf32>
    %22 = math.rsqrt %21 : vector<1x4x1xf32>
    %23 = arith.mulf %17, %22 : vector<1x4x1xf32>
    %24 = vector.broadcast %23 : vector<1x4x1xf32> to vector<2x4x256xf32>
    %25 = arith.mulf %8, %24 : vector<2x4x256xf32>
    %26 = vector.broadcast %19 : vector<1x4x1xf32> to vector<2x4x256xf32>
    %27 = arith.addf %25, %26 : vector<2x4x256xf32>
    %cst_12 = arith.constant 0.000000e+00 : f32
    %28 = vector.broadcast %cst_12 : f32 to vector<2x4x256xf32>
    %29 = arith.maximumf %27, %28 : vector<2x4x256xf32>
    %c0_13 = arith.constant 0 : index
    %c0_14 = arith.constant 0 : index
    %c0_15 = arith.constant 0 : index
    %30 = vector.load %arg4[%c0_13, %c0_14, %c0_15] : memref<2x4x256xf32, #tpu.memory_space<vmem>>, vector<2x4x256xf32>
    tpu.vector_store %arg4[%c0_13, %c0_14, %c0_15], %29 {strides = array<i32>} : memref<2x4x256xf32, #tpu.memory_space<vmem>>, vector<2x4x256xf32>,
    tpu.enqueue_dma source(%arg4 : memref<2x4x256xf32, #tpu.memory_space<vmem>>) target(%arg3 : memref<2x4x256xf32, #tpu.memory_space<any>>) target_semaphore(%arg5 : memref<!tpu.dma_semaphore, #tpu.memory_space<semaphore_mem>>)
    tpu.wait_dma2 semaphore(%arg5 : memref<!tpu.dma_semaphore, #tpu.memory_space<semaphore_mem>>) src(%arg4 : memref<2x4x256xf32, #tpu.memory_space<vmem>>) dst(%arg3 : memref<2x4x256xf32, #tpu.memory_space<any>>)
    return
  }
}

</mosaic_0001>

<llo_original>
// kernel: tpu_custom_call.1
$region0: #{tpu_custom_call.1}
  #allocation0 [shape = 'u32[]', space=smem, size = 0x4, offset = 0x4, fixed_abs, tag = 'smem constant byte address 0x4 - core index']
  #allocation1 [shape = 'u32[144,128]{1,0:T(1,128)}', space=vmem, size = 0x12000, scoped, tag = 'internal scratch']
  #allocation2 [shape = 'f32[2,4,256]{2,1,0:T(4,128)}', space=vmem, size = 0x2000, scoped, tag = 'scratch operand']
  #allocation3 [shape = 's32[1]{0}', space=sflag, size = 0x4, scoped, tag = 'scratch operand']
  #allocation4 [shape = 's32[]', space=sflag, size = 0x4, offset = 0, fixed_abs, tag = 'sflag constant byte address 0x0 - dummy sync flag']
  #allocation5 [shape = 's32[]', space=sflag, size = 0x4, offset = 0, fixed_abs, tag = 'sflag constant byte address 0x0 - dummy sync flag']
  #allocation6 [shape = 'u32[]', space=smem, size = 0x4, offset = 0x44, fixed_abs, tag = 'smem constant byte address 0x44 - assertion arg 0']
  #allocation7 [shape = 'u32[]', space=smem, size = 0x4, offset = 0x48, fixed_abs, tag = 'smem constant byte address 0x48 - assertion arg 1']
  #allocation8 [shape = 's32[]', space=sflag, size = 0x4, offset = 0, fixed_abs, tag = 'sflag constant byte address 0x0 - dummy sync flag']
  #allocation9 [shape = 's32[]', space=sflag, size = 0x4, offset = 0, fixed_abs, tag = 'sflag constant byte address 0x0 - dummy sync flag']
  %s0 = inlined_call_operand.hbm [shape: f32[2,4,256], index: 0, kind: input, shape index: {}]
  %s1 = inlined_call_operand.vmem [shape: f32[4,1], index: 1, kind: input, shape index: {}]
  %s2 = inlined_call_operand.vmem [shape: f32[4,1], index: 2, kind: input, shape index: {}]
  %s3 = inlined_call_operand.hbm [shape: f32[2,4,256], index: 3, kind: output, shape index: {}]
  %s4 = sld [smem:[#allocation0]]
  $region18: #{tpu_custom_call.1} parent=0
    _
  %s6 = ssub.s32 1, %s4
  %s7 = scalar_select 0, %s6, %s4
  // Predicated region
  $region2: #{tpu_custom_call.1} parent=0 // pred_check
    _
  $region3: #{tpu_custom_call.1} parent=0 // pred_check_branch
    %9 = sbr.rel (0) target = $region5
  $region4: #{tpu_custom_call.1} parent=0 // pred_region
    _
  $region5: #{tpu_custom_call.1} parent=0 // pred_fallthru
    _
  // Predicated region
  $region6: #{tpu_custom_call.1} parent=0 // pred_check
    _
  $region7: #{tpu_custom_call.1} parent=0 // pred_check_branch
    %11 = sbr.rel (0) target = $region9
  $region8: #{tpu_custom_call.1} parent=0 // pred_region
    _
  $region9: #{tpu_custom_call.1} parent=0 // pred_fallthru
    _
  // Predicated region
  $region10: #{tpu_custom_call.1} parent=0 // pred_check
    _
  $region11: #{tpu_custom_call.1} parent=0 // pred_check_branch
    %13 = sbr.rel target = $region13
  $region12: #{tpu_custom_call.1} parent=0 // pred_region
    %14 = sst [smem:[#allocation6]] [#allocation5]
    %15 = sst [smem:[#allocation7]] [#allocation4]
  $region13: #{tpu_custom_call.1} parent=0 // pred_fallthru
    _
  %17 = shalt.err (0)
  %s19 = sshll.u32 [#allocation2], 4
  %s20 = int_to_ptr.vmem [resolvable:$true] %s19
  %22 = dma.hbm_to_vmem [thread:$0]  %s0, 256, %s20, [#allocation3]
  %s23 = smul.u32 4, 2
  %s24 = smul.u32 %s23, 1
  %s25 = smul.u32 %s24, 2
  %s26 = sshll.u32 %s25, 4
  %27 = dma.done [#allocation3], %s26
  %v28 = vld [vmem:[#allocation2] sm:$0xff]
  %v29 = vld [vmem:[#allocation2 + $0x8] sm:$0xff]
  %v32 = vcombine.high %v28, %v28
  %v33 = vcombine.high %v29, %v29
  %vm36 = vcmask 1043456
  %v37 = vsel %vm36, %v28, 0.0
  %v38 = vsel %vm36, %v32, 0.0
  %v39 = vadd.f32 %v37, %v38
  %40 = vadd.xlane.f32.xlu0 %v39
  %v41 = vpop.xlane.xlu0 %40
  %v42 = vsel %vm36, %v29, 0.0
  %v43 = vsel %vm36, %v33, 0.0
  %v44 = vadd.f32 %v42, %v43
  %45 = vadd.xlane.f32.xlu0 %v44
  %v46 = vpop.xlane.xlu0 %45
  %v47 = vsel %vm36, %v41, 0.0
  %v48 = vsel %vm36, %v46, 0.0
  %v49 = vadd.f32 %v47, %v48
  %v50 = vmul.f32 %v49, 0.001953125
  %v53 = vunpack.c.l.s4 839922192
  %v54 = vunpack.c.0.s8 %v53
  %v55 = vlaneseq
  %v56 = vshrl.u32 %v55, 7
  %v57 = vsub.s32 %v54, %v56
  %v58 = vrot.slane %v50, %v57
  %v60 = vsub.f32 %v28, %v58
  %v61 = vsub.f32 %v29, %v58
  %v62 = vmul.f32 %v60, %v60
  %v63 = vmul.f32 %v61, %v61
  %v66 = vcombine.high %v62, %v62
  %v67 = vcombine.high %v63, %v63
  %v70 = vsel %vm36, %v62, 0.0
  %v71 = vsel %vm36, %v66, 0.0
  %v72 = vadd.f32 %v70, %v71
  %73 = vadd.xlane.f32.xlu0 %v72
  %v74 = vpop.xlane.xlu0 %73
  %v75 = vsel %vm36, %v63, 0.0
  %v76 = vsel %vm36, %v67, 0.0
  %v77 = vadd.f32 %v75, %v76
  %78 = vadd.xlane.f32.xlu0 %v77
  %v79 = vpop.xlane.xlu0 %78
  %v80 = vsel %vm36, %v74, 0.0
  %v81 = vsel %vm36, %v79, 0.0
  %v82 = vadd.f32 %v80, %v81
  %v83 = vmul.f32 %v82, 0.001953125
  %v84 = vld [vmem:[%s1] sm:$0xf]
  %v85 = vld [vmem:[%s2] sm:$0xf]
  %v86 = vadd.f32 %v83, 1e-05
  %v87 = vrsqrt.pop %v86
  %v88 = vmul.f32 %v84, %v87
  %90 = vset.pattern.permute.xlu0 0
  %91 = vperm.xlu0 %90, %v88
  %v92 = vpop.permute.xlu0 %91
  %v94 = vunpack.c.l.s4 839922192
  %v95 = vunpack.c.0.s8 %v94
  %v96 = vlaneseq
  %v97 = vshrl.u32 %v96, 7
  %v98 = vsub.s32 %v95, %v97
  %v99 = vrot.slane %v92, %v98
  %v101 = vmul.f32 %v60, %v99
  %v102 = vmul.f32 %v61, %v99
  %104 = vset.pattern.permute.xlu0 0
  %105 = vperm.xlu0 %104, %v85
  %v106 = vpop.permute.xlu0 %105
  %v108 = vunpack.c.l.s4 839922192
  %v109 = vunpack.c.0.s8 %v108
  %v110 = vlaneseq
  %v111 = vshrl.u32 %v110, 7
  %v112 = vsub.s32 %v109, %v111
  %v113 = vrot.slane %v106, %v112
  %v115 = vadd.f32 %v101, %v113
  %v116 = vadd.f32 %v102, %v113
  %v117 = vmax.f32 %v115, 0.0
  %v118 = vmax.f32 %v116, 0.0
  %119 = vst [vmem:[#allocation2] sm:$0xff] %v117
  %120 = vst [vmem:[#allocation2 + $0x8] sm:$0xff] %v118
  // Predicated region
  $region14: #{tpu_custom_call.1} parent=0 // pred_check
    _
  $region15: #{tpu_custom_call.1} parent=0 // pred_check_branch
    %122 = sbr.rel target = $region17
  $region16: #{tpu_custom_call.1} parent=0 // pred_region
    %123 = sst [smem:[#allocation6]] [#allocation9]
    %124 = sst [smem:[#allocation7]] [#allocation8]
  $region17: #{tpu_custom_call.1} parent=0 // pred_fallthru
    _
  %126 = shalt.err (0)
  %s128 = sshll.u32 [#allocation2], 4
  %s129 = int_to_ptr.vmem [resolvable:$true] %s128
  %131 = dma.vmem_to_hbm [thread:$0]  %s129, 256, %s3, [#allocation3]
  %s132 = sshll.u32 %s25, 4
  %133 = dma.done [#allocation3], %s132
  %134 = vsyncmov [#allocation3]
  %s135 = vpop.sfrf %134
  %p136 = scmp.eq.s32.totalorder %s135, 0
  %p137 = pneg %p136
  %139 = shalt.err (%p137)

</llo_original>
